<compile_context>
chip_gen: v7x
topology: tpu7x:2x2x1
jax: 0.10.0
libtpu: 0.0.40
codegen_flags: <defaults>
</compile_context>

<pallas_src>
import math

import jax
import jax.numpy as jnp
from jax.experimental import pallas as pl
from jax.experimental.pallas import tpu as pltpu


REPARAM_NOISE = 1e-6
_TM_CAP = 2048  # lane-tile cap; working set ~8-10 MB << VMEM on v5e/v6e/v7x


def _round_up(x, m):
    return ((x + m - 1) // m) * m


def _pick_tm(batch):
    """Batch (lane) tile: lane-dense multiples of 128, >=2 grid steps when the
    batch allows it (v7x dual-TC), capped at _TM_CAP."""
    if batch < 256:
        return batch                      # single full-extent block
    return min(_TM_CAP, _round_up(batch // 2, 128))


def actor_kernel(x_ref, w1_ref, b1_ref, w2_ref, b2_ref, wh_ref, bh_ref,
                 lo_ref, hi_ref, out_ref):
    """Batch lives on the lane axis: x is (input_dim, TM), out is (head_rows, TM)."""
    wdt = w1_ref.dtype
    x = x_ref[...].astype(wdt)

    # fc1 + relu.  K=input_dim (e.g. 8) under-fills the MXU contraction rows,
    # but fc1 is ~3% of total FLOPs -- intentionally left unpadded.
    h1 = jnp.dot(w1_ref[...], x, preferred_element_type=jnp.float32) + b1_ref[...]
    h1 = jnp.maximum(h1, 0.0).astype(wdt)      # narrow spilled intermediate

    # fc2 + relu
    h2 = jnp.dot(w2_ref[...], h1, preferred_element_type=jnp.float32) + b2_ref[...]
    h2 = jnp.maximum(h2, 0.0).astype(wdt)

    # fused mu|sigma heads: (head_rows, fc2) @ (fc2, TM) -> (head_rows, TM)
    heads = jnp.dot(wh_ref[...], h2, preferred_element_type=jnp.float32) + bh_ref[...]

    # sigma clamp as two per-lane VPU ops: lo/hi are (head_rows, 1), -inf/+inf
    # on mu rows and [1e-6, 1.0] on sigma rows (broadcast along lanes).
    out_ref[...] = jnp.minimum(jnp.maximum(heads, lo_ref[...]), hi_ref[...])


def actor_forward(state, packed_params, n_actions):
    """Full actor MLP in one Pallas kernel; returns (mu, sigma), each (B, n_actions)."""
    w1t, b1, w2t, b2, wht, bh, lo, hi = packed_params
    B, input_dim = state.shape
    fc1 = w1t.shape[0]
    fc2 = w2t.shape[0]
    head_rows = wht.shape[0]

    tm = _pick_tm(B)
    b_pad = _round_up(B, tm)
    x_t = state.T                                 # (input_dim, B): batch on lanes
    if b_pad != B:
        x_t = jnp.pad(x_t, ((0, 0), (0, b_pad - B)))
    grid = (b_pad // tm,)

    itemsize = lambda a: a.size * a.dtype.itemsize
    flops = 2 * b_pad * (input_dim * fc1 + fc1 * fc2 + fc2 * head_rows)
    bytes_accessed = (itemsize(x_t)
                      + sum(itemsize(p) for p in packed_params)
                      + b_pad * head_rows * 4)

    out = pl.pallas_call(
        actor_kernel,
        out_shape=jax.ShapeDtypeStruct((head_rows, b_pad), jnp.float32),
        grid_spec=pltpu.PrefetchScalarGridSpec(
            num_scalar_prefetch=0,
            grid=grid,
            in_specs=[
                pl.BlockSpec((input_dim, tm), lambda i: (0, i)),   # state tile
                pl.BlockSpec((fc1, input_dim), lambda i: (0, 0)),  # W1^T (resident)
                pl.BlockSpec((fc1, 1), lambda i: (0, 0)),          # b1
                pl.BlockSpec((fc2, fc1), lambda i: (0, 0)),        # W2^T
                pl.BlockSpec((fc2, 1), lambda i: (0, 0)),          # b2
                pl.BlockSpec((head_rows, fc2), lambda i: (0, 0)),  # W_heads^T (fused mu|sigma)
                pl.BlockSpec((head_rows, 1), lambda i: (0, 0)),    # b_heads
                pl.BlockSpec((head_rows, 1), lambda i: (0, 0)),    # clamp lo
                pl.BlockSpec((head_rows, 1), lambda i: (0, 0)),    # clamp hi
            ],
            out_specs=pl.BlockSpec((head_rows, tm), lambda i: (0, i)),
        ),
        compiler_params=pltpu.CompilerParams(
            dimension_semantics=("parallel",),
            vmem_limit_bytes=32 * 1024 * 1024),
        cost_estimate=pl.CostEstimate(flops=flops, transcendentals=0,
                                      bytes_accessed=bytes_accessed),
    )(x_t, w1t, b1, w2t, b2, wht, bh, lo, hi)

    mu = out[:n_actions, :B].T
    sigma = out[n_actions:2 * n_actions, :B].T
    return mu, sigma


def init_linear_params(key, fan_in, fan_out):
    """PyTorch nn.Linear default init: U(-1/sqrt(fan_in), 1/sqrt(fan_in))."""
    kw, kb = jax.random.split(key)
    bound = 1.0 / math.sqrt(fan_in)
    w = jax.random.uniform(kw, (fan_in, fan_out), jnp.float32, -bound, bound)
    b = jax.random.uniform(kb, (fan_out,), jnp.float32, -bound, bound)
    return w, b


def make_params(key, input_dim, fc1_dims, fc2_dims, n_actions):
    k1, k2, k3, k4 = jax.random.split(key, 4)
    w1, b1 = init_linear_params(k1, input_dim, fc1_dims)
    w2, b2 = init_linear_params(k2, fc1_dims, fc2_dims)
    wmu, bmu = init_linear_params(k3, fc2_dims, n_actions)
    wsig, bsig = init_linear_params(k4, fc2_dims, n_actions)
    return (w1, b1, w2, b2, wmu, bmu, wsig, bsig)


def pack_params(raw_params, n_actions, weight_dtype=jnp.bfloat16):
    """Pre-transpose weights for the batch-on-lanes layout, fuse the mu/sigma
    heads (zero-padded to 8 sublane rows), and build per-row clamp bounds.
    Weights are cast to `weight_dtype` (bf16 default: halves weight DMA and
    hits the fast MXU path on all gens); biases / clamp bounds stay f32."""
    w1, b1, w2, b2, wmu, bmu, wsig, bsig = raw_params
    fc1, fc2 = w1.shape[1], w2.shape[1]
    head_rows = max(8, _round_up(2 * n_actions, 8))

    wht = jnp.zeros((head_rows, fc2), jnp.float32)
    wht = wht.at[:n_actions, :].set(wmu.T)
    wht = wht.at[n_actions:2 * n_actions, :].set(wsig.T)
    bh = jnp.zeros((head_rows, 1), jnp.float32)
    bh = bh.at[:n_actions, 0].set(bmu)
    bh = bh.at[n_actions:2 * n_actions, 0].set(bsig)

    lo = jnp.full((head_rows, 1), -jnp.inf, jnp.float32)
    lo = lo.at[n_actions:2 * n_actions, 0].set(REPARAM_NOISE)
    hi = jnp.full((head_rows, 1), jnp.inf, jnp.float32)
    hi = hi.at[n_actions:2 * n_actions, 0].set(1.0)

    return (w1.T.astype(weight_dtype), b1.reshape(fc1, 1),
            w2.T.astype(weight_dtype), b2.reshape(fc2, 1),
            wht.astype(weight_dtype), bh, lo, hi)


def reference_forward(state, packed_params, n_actions):
    """Plain-JAX reference of the same forward pass (same layout/dtype policy)."""
    w1t, b1, w2t, b2, wht, bh, lo, hi = packed_params
    x = state.T.astype(w1t.dtype)
    h1 = jnp.maximum(jnp.dot(w1t, x, preferred_element_type=jnp.float32) + b1,
                     0.0).astype(w2t.dtype)
    h2 = jnp.maximum(jnp.dot(w2t, h1, preferred_element_type=jnp.float32) + b2,
                     0.0).astype(wht.dtype)
    heads = jnp.dot(wht, h2, preferred_element_type=jnp.float32) + bh
    heads = jnp.minimum(jnp.maximum(heads, lo), hi)
    mu = heads[:n_actions, :].T
    sigma = heads[n_actions:2 * n_actions, :].T
    return mu, sigma


if __name__ == "__main__":
    # Small shapes consistent with the module:
    # input_dims=(8,), fc1_dims=256, fc2_dims=256, n_actions=2, batch=8.
    B, INPUT_DIM, FC1, FC2, N_ACTIONS = 8, 8, 256, 256, 2

    key = jax.random.PRNGKey(0)
    k_state, k_params, k_big = jax.random.split(key, 3)

    state = jax.random.normal(k_state, (B, INPUT_DIM), jnp.float32)
    raw_params = make_params(k_params, INPUT_DIM, FC1, FC2, N_ACTIONS)
    # float32(1e-6) is slightly below the Python double 1e-6; compare against it.
    clamp_lo = float(jnp.float32(REPARAM_NOISE))

    # --- f32 weights: exactly matches the PyTorch module math ---
    packed_f32 = pack_params(raw_params, N_ACTIONS, weight_dtype=jnp.float32)
    mu, sigma = actor_forward(state, packed_f32, N_ACTIONS)
    jax.block_until_ready((mu, sigma))
    mu_ref, sigma_ref = reference_forward(state, packed_f32, N_ACTIONS)
    assert mu.shape == (B, N_ACTIONS) and sigma.shape == (B, N_ACTIONS)
    assert jnp.allclose(mu, mu_ref, atol=1e-5, rtol=1e-5)
    assert jnp.allclose(sigma, sigma_ref, atol=1e-5, rtol=1e-5)
    assert float(sigma.min()) >= clamp_lo and float(sigma.max()) <= 1.0

    # --- bf16 weights (default fast path): f32 MXU accumulation ---
    packed_bf16 = pack_params(raw_params, N_ACTIONS)            # bf16 default
    mu_b, sigma_b = actor_forward(state, packed_bf16, N_ACTIONS)
    jax.block_until_ready((mu_b, sigma_b))
    mu_rb, sigma_rb = reference_forward(state, packed_bf16, N_ACTIONS)
    assert jnp.allclose(mu_b, mu_rb, atol=1e-2, rtol=1e-2)
    assert jnp.allclose(sigma_b, sigma_rb, atol=1e-2, rtol=1e-2)
    assert float(sigma_b.min()) >= clamp_lo and float(sigma_b.max()) <= 1.0

    # --- larger, ragged batch: exercises multi-step grid + lane padding ---
    B2 = 300
    state2 = jax.random.normal(k_big, (B2, INPUT_DIM), jnp.float32)
    mu2, sigma2 = actor_forward(state2, packed_bf16, N_ACTIONS)
    jax.block_until_ready((mu2, sigma2))
    mu2_ref, sigma2_ref = reference_forward(state2, packed_bf16, N_ACTIONS)
    assert mu2.shape == (B2, N_ACTIONS) and sigma2.shape == (B2, N_ACTIONS)
    assert jnp.allclose(mu2, mu2_ref, atol=1e-2, rtol=1e-2)
    assert jnp.allclose(sigma2, sigma2_ref, atol=1e-2, rtol=1e-2)

    # TODO(synk): sample_normal (Normal rsample + tanh squash + log_prob) is
    # stochastic and outside the forward hot path; left in host JAX.

    print("KERNEL_OK")
</pallas_src>

<mosaic_0001>
module attributes {stable_mosaic.version = 11 : i64} {
  func.func @actor_kernel(%arg0: i32, %arg1: memref<8x8xf32, #tpu.memory_space<vmem>>, %arg2: memref<256x8xf32, #tpu.memory_space<vmem>>, %arg3: memref<256x1xf32, #tpu.memory_space<vmem>>, %arg4: memref<256x256xf32, #tpu.memory_space<vmem>>, %arg5: memref<256x1xf32, #tpu.memory_space<vmem>>, %arg6: memref<8x256xf32, #tpu.memory_space<vmem>>, %arg7: memref<8x1xf32, #tpu.memory_space<vmem>>, %arg8: memref<8x1xf32, #tpu.memory_space<vmem>>, %arg9: memref<8x1xf32, #tpu.memory_space<vmem>>, %arg10: memref<8x8xf32, #tpu.memory_space<vmem>>) attributes {dimension_semantics = [#tpu.dimension_semantics<parallel>], iteration_bounds = array<i64: 1>, scalar_prefetch = 0 : i64, scratch_operands = 0 : i64, tpu.core_type = #tpu.core_type<tc>, window_params = [{transform_indices = @transform_0, window_bounds = array<i64: 8, 8>}, {pipeline_mode = #tpu.pipeline_mode<synchronous>, transform_indices = @transform_1, window_bounds = array<i64: 256, 8>}, {pipeline_mode = #tpu.pipeline_mode<synchronous>, transform_indices = @transform_2, window_bounds = array<i64: 256, 1>}, {pipeline_mode = #tpu.pipeline_mode<synchronous>, transform_indices = @transform_3, window_bounds = array<i64: 256, 256>}, {pipeline_mode = #tpu.pipeline_mode<synchronous>, transform_indices = @transform_4, window_bounds = array<i64: 256, 1>}, {pipeline_mode = #tpu.pipeline_mode<synchronous>, transform_indices = @transform_5, window_bounds = array<i64: 8, 256>}, {pipeline_mode = #tpu.pipeline_mode<synchronous>, transform_indices = @transform_6, window_bounds = array<i64: 8, 1>}, {pipeline_mode = #tpu.pipeline_mode<synchronous>, transform_indices = @transform_7, window_bounds = array<i64: 8, 1>}, {pipeline_mode = #tpu.pipeline_mode<synchronous>, transform_indices = @transform_8, window_bounds = array<i64: 8, 1>}, {transform_indices = @transform_9, window_bounds = array<i64: 8, 8>}]} {
    %c0 = arith.constant 0 : index
    %c0_0 = arith.constant 0 : index
    %0 = vector.load %arg1[%c0, %c0_0] : memref<8x8xf32, #tpu.memory_space<vmem>>, vector<8x8xf32>
    %c0_1 = arith.constant 0 : index
    %c0_2 = arith.constant 0 : index
    %1 = vector.load %arg2[%c0_1, %c0_2] : memref<256x8xf32, #tpu.memory_space<vmem>>, vector<256x8xf32>
    %cst = arith.constant dense<0.000000e+00> : vector<256x8xf32>
    %2 = tpu.matmul %1, %0, %cst {dimension_numbers = #tpu.dot_dimension_numbers<[1], [0], [0], [1], [0, 0, 1, 1], [], []>} : vector<256x8xf32>, vector<8x8xf32>, vector<256x8xf32> -> vector<256x8xf32>
    %c0_3 = arith.constant 0 : index
    %c0_4 = arith.constant 0 : index
    %3 = vector.load %arg3[%c0_3, %c0_4] : memref<256x1xf32, #tpu.memory_space<vmem>>, vector<256x1xf32>
    %4 = vector.broadcast %3 : vector<256x1xf32> to vector<256x8xf32>
    %5 = arith.addf %2, %4 : vector<256x8xf32>
    %cst_5 = arith.constant 0.000000e+00 : f32
    %6 = vector.broadcast %cst_5 : f32 to vector<256x8xf32>
    %7 = arith.maximumf %5, %6 : vector<256x8xf32>
    %c0_6 = arith.constant 0 : index
    %c0_7 = arith.constant 0 : index
    %8 = vector.load %arg4[%c0_6, %c0_7] : memref<256x256xf32, #tpu.memory_space<vmem>>, vector<256x256xf32>
    %cst_8 = arith.constant dense<0.000000e+00> : vector<256x8xf32>
    %9 = tpu.matmul %8, %7, %cst_8 {dimension_numbers = #tpu.dot_dimension_numbers<[1], [0], [0], [1], [0, 0, 1, 1], [], []>} : vector<256x256xf32>, vector<256x8xf32>, vector<256x8xf32> -> vector<256x8xf32>
    %c0_9 = arith.constant 0 : index
    %c0_10 = arith.constant 0 : index
    %10 = vector.load %arg5[%c0_9, %c0_10] : memref<256x1xf32, #tpu.memory_space<vmem>>, vector<256x1xf32>
    %11 = vector.broadcast %10 : vector<256x1xf32> to vector<256x8xf32>
    %12 = arith.addf %9, %11 : vector<256x8xf32>
    %cst_11 = arith.constant 0.000000e+00 : f32
    %13 = vector.broadcast %cst_11 : f32 to vector<256x8xf32>
    %14 = arith.maximumf %12, %13 : vector<256x8xf32>
    %c0_12 = arith.constant 0 : index
    %c0_13 = arith.constant 0 : index
    %15 = vector.load %arg6[%c0_12, %c0_13] : memref<8x256xf32, #tpu.memory_space<vmem>>, vector<8x256xf32>
    %cst_14 = arith.constant dense<0.000000e+00> : vector<8x8xf32>
    %16 = tpu.matmul %15, %14, %cst_14 {dimension_numbers = #tpu.dot_dimension_numbers<[1], [0], [0], [1], [0, 0, 1, 1], [], []>} : vector<8x256xf32>, vector<256x8xf32>, vector<8x8xf32> -> vector<8x8xf32>
    %c0_15 = arith.constant 0 : index
    %c0_16 = arith.constant 0 : index
    %17 = vector.load %arg7[%c0_15, %c0_16] : memref<8x1xf32, #tpu.memory_space<vmem>>, vector<8x1xf32>
    %18 = vector.broadcast %17 : vector<8x1xf32> to vector<8x8xf32>
    %19 = arith.addf %16, %18 : vector<8x8xf32>
    %c0_17 = arith.constant 0 : index
    %c0_18 = arith.constant 0 : index
    %20 = vector.load %arg8[%c0_17, %c0_18] : memref<8x1xf32, #tpu.memory_space<vmem>>, vector<8x1xf32>
    %21 = vector.broadcast %20 : vector<8x1xf32> to vector<8x8xf32>
    %22 = arith.maximumf %19, %21 : vector<8x8xf32>
    %c0_19 = arith.constant 0 : index
    %c0_20 = arith.constant 0 : index
    %23 = vector.load %arg9[%c0_19, %c0_20] : memref<8x1xf32, #tpu.memory_space<vmem>>, vector<8x1xf32>
    %24 = vector.broadcast %23 : vector<8x1xf32> to vector<8x8xf32>
    %25 = arith.minimumf %22, %24 : vector<8x8xf32>
    %c0_21 = arith.constant 0 : index
    %c0_22 = arith.constant 0 : index
    %26 = vector.load %arg10[%c0_21, %c0_22] : memref<8x8xf32, #tpu.memory_space<vmem>>, vector<8x8xf32>
    tpu.vector_store %arg10[%c0_21, %c0_22], %25 {strides = array<i32>} : memref<8x8xf32, #tpu.memory_space<vmem>>, vector<8x8xf32>,
    return
  }
  func.func @transform_0(%arg0: i32) -> (i32, i32) {
    %c0_i32 = arith.constant 0 : i32
    %c0_i32_0 = arith.constant 0 : i32
    return %c0_i32, %arg0 : i32, i32
  }
  func.func @transform_1(%arg0: i32) -> (i32, i32) {
    %c0_i32 = arith.constant 0 : i32
    %c0_i32_0 = arith.constant 0 : i32
    %c0_i32_1 = arith.constant 0 : i32
    return %c0_i32, %c0_i32_0 : i32, i32
  }
  func.func @transform_2(%arg0: i32) -> (i32, i32) {
    %c0_i32 = arith.constant 0 : i32
    %c0_i32_0 = arith.constant 0 : i32
    %c0_i32_1 = arith.constant 0 : i32
    return %c0_i32, %c0_i32_0 : i32, i32
  }
  func.func @transform_3(%arg0: i32) -> (i32, i32) {
    %c0_i32 = arith.constant 0 : i32
    %c0_i32_0 = arith.constant 0 : i32
    %c0_i32_1 = arith.constant 0 : i32
    return %c0_i32, %c0_i32_0 : i32, i32
  }
  func.func @transform_4(%arg0: i32) -> (i32, i32) {
    %c0_i32 = arith.constant 0 : i32
    %c0_i32_0 = arith.constant 0 : i32
    %c0_i32_1 = arith.constant 0 : i32
    return %c0_i32, %c0_i32_0 : i32, i32
  }
  func.func @transform_5(%arg0: i32) -> (i32, i32) {
    %c0_i32 = arith.constant 0 : i32
    %c0_i32_0 = arith.constant 0 : i32
    %c0_i32_1 = arith.constant 0 : i32
    return %c0_i32, %c0_i32_0 : i32, i32
  }
  func.func @transform_6(%arg0: i32) -> (i32, i32) {
    %c0_i32 = arith.constant 0 : i32
    %c0_i32_0 = arith.constant 0 : i32
    %c0_i32_1 = arith.constant 0 : i32
    return %c0_i32, %c0_i32_0 : i32, i32
  }
  func.func @transform_7(%arg0: i32) -> (i32, i32) {
    %c0_i32 = arith.constant 0 : i32
    %c0_i32_0 = arith.constant 0 : i32
    %c0_i32_1 = arith.constant 0 : i32
    return %c0_i32, %c0_i32_0 : i32, i32
  }
  func.func @transform_8(%arg0: i32) -> (i32, i32) {
    %c0_i32 = arith.constant 0 : i32
    %c0_i32_0 = arith.constant 0 : i32
    %c0_i32_1 = arith.constant 0 : i32
    return %c0_i32, %c0_i32_0 : i32, i32
  }
  func.func @transform_9(%arg0: i32) -> (i32, i32) {
    %c0_i32 = arith.constant 0 : i32
    %c0_i32_0 = arith.constant 0 : i32
    return %c0_i32, %arg0 : i32, i32
  }
}

</mosaic_0001>

<llo_original>
// kernel: tpu_custom_call.1
$region0: #{tpu_custom_call.1}
  #allocation0 [shape = 'u32[]', space=smem, size = 0x4, offset = 0x4, fixed_abs, tag = 'smem constant byte address 0x4 - core index']
  #allocation1 [shape = 'u32[144,128]{1,0:T(1,128)}', space=vmem, size = 0x12000, scoped, tag = 'internal scratch']
  %s0 = inlined_call_operand.vmem [shape: f32[8,8], index: 0, kind: input, shape index: {}]
  %s1 = inlined_call_operand.vmem [shape: f32[256,8], index: 1, kind: input, shape index: {}]
  %s2 = inlined_call_operand.vmem [shape: f32[256,1], index: 2, kind: input, shape index: {}]
  %s3 = inlined_call_operand.vmem [shape: f32[256,256], index: 3, kind: input, shape index: {}]
  %s4 = inlined_call_operand.vmem [shape: f32[256,1], index: 4, kind: input, shape index: {}]
  %s5 = inlined_call_operand.vmem [shape: f32[8,256], index: 5, kind: input, shape index: {}]
  %s6 = inlined_call_operand.vmem [shape: f32[8,1], index: 6, kind: input, shape index: {}]
  %s7 = inlined_call_operand.vmem [shape: f32[8,1], index: 7, kind: input, shape index: {}]
  %s8 = inlined_call_operand.vmem [shape: f32[8,1], index: 8, kind: input, shape index: {}]
  %s9 = inlined_call_operand.hbm [shape: f32[8,8], index: 9, kind: output, shape index: {}]
  %s10 = sld [smem:[#allocation0]]
  $region46: #{tpu_custom_call.1} parent=0
    _
  %s12 = ssub.s32 1, %s10
  %s13 = scalar_select 0, %s12, %s10
  $region1: #{tpu_custom_call.1} parent=0
    #allocation2 [shape = 'u8[4096]{0}', space=vmem, size = 0x1000, scoped, tag = 'output window, operand 0, single buffered']
    #allocation3 [shape = 's32[1]{0}', space=sflag, size = 0x4, scoped, tag = 'scoped memory for tpu_custom_call.1']
    %14 = vsyncpa [#allocation3], 0
    // Predicated region
    $region2: #{tpu_custom_call.1} parent=1 // pred_check
      _
    $region3: #{tpu_custom_call.1} parent=1 // pred_check_branch
      %16 = sbr.rel (0) target = $region5
    $region4: #{tpu_custom_call.1} parent=1 // pred_region
      _
    $region5: #{tpu_custom_call.1} parent=1 // pred_fallthru
      _
    // Predicated region
    $region6: #{tpu_custom_call.1} parent=1 // pred_check
      _
    $region7: #{tpu_custom_call.1} parent=1 // pred_check_branch
      %18 = sbr.rel (0) target = $region9
    $region8: #{tpu_custom_call.1} parent=1 // pred_region
      _
    $region9: #{tpu_custom_call.1} parent=1 // pred_fallthru
      _
    // Predicated region
    $region10: #{tpu_custom_call.1} parent=1 // pred_check
      _
    $region11: #{tpu_custom_call.1} parent=1 // pred_check_branch
      %20 = sbr.rel (0) target = $region13
    $region12: #{tpu_custom_call.1} parent=1 // pred_region
      _
    $region13: #{tpu_custom_call.1} parent=1 // pred_fallthru
      _
    // Predicated region
    $region14: #{tpu_custom_call.1} parent=1 // pred_check
      _
    $region15: #{tpu_custom_call.1} parent=1 // pred_check_branch
      %22 = sbr.rel (0) target = $region17
    $region16: #{tpu_custom_call.1} parent=1 // pred_region
      _
    $region17: #{tpu_custom_call.1} parent=1 // pred_fallthru
      _
    // Predicated region
    $region18: #{tpu_custom_call.1} parent=1 // pred_check
      _
    $region19: #{tpu_custom_call.1} parent=1 // pred_check_branch
      %24 = sbr.rel (0) target = $region21
    $region20: #{tpu_custom_call.1} parent=1 // pred_region
      _
    $region21: #{tpu_custom_call.1} parent=1 // pred_fallthru
      _
    // Predicated region
    $region22: #{tpu_custom_call.1} parent=1 // pred_check
      _
    $region23: #{tpu_custom_call.1} parent=1 // pred_check_branch
      %26 = sbr.rel (0) target = $region25
    $region24: #{tpu_custom_call.1} parent=1 // pred_region
      _
    $region25: #{tpu_custom_call.1} parent=1 // pred_fallthru
      _
    // Predicated region
    $region26: #{tpu_custom_call.1} parent=1 // pred_check
      _
    $region27: #{tpu_custom_call.1} parent=1 // pred_check_branch
      %28 = sbr.rel (0) target = $region29
    $region28: #{tpu_custom_call.1} parent=1 // pred_region
      _
    $region29: #{tpu_custom_call.1} parent=1 // pred_fallthru
      _
    // Predicated region
    $region30: #{tpu_custom_call.1} parent=1 // pred_check
      _
    $region31: #{tpu_custom_call.1} parent=1 // pred_check_branch
      %30 = sbr.rel (0) target = $region33
    $region32: #{tpu_custom_call.1} parent=1 // pred_region
      _
    $region33: #{tpu_custom_call.1} parent=1 // pred_fallthru
      _
    // Predicated region
    $region34: #{tpu_custom_call.1} parent=1 // pred_check
      _
    $region35: #{tpu_custom_call.1} parent=1 // pred_check_branch
      %32 = sbr.rel (0) target = $region37
    $region36: #{tpu_custom_call.1} parent=1 // pred_region
      _
    $region37: #{tpu_custom_call.1} parent=1 // pred_fallthru
      _
    %v33 = vld [vmem:[%s0] sm:$0xff]
    %v34 = vld [vmem:[%s1] sm:$0xff]
    %v35 = vld [vmem:[%s1 + $0x8] sm:$0xff]
    %v36 = vld [vmem:[%s1 + $0x10] sm:$0xff]
    %v37 = vld [vmem:[%s1 + $0x18] sm:$0xff]
    %v38 = vld [vmem:[%s1 + $0x20] sm:$0xff]
    %v39 = vld [vmem:[%s1 + $0x28] sm:$0xff]
    %v40 = vld [vmem:[%s1 + $0x30] sm:$0xff]
    %v41 = vld [vmem:[%s1 + $0x38] sm:$0xff]
    %v42 = vld [vmem:[%s1 + $0x40] sm:$0xff]
    %v43 = vld [vmem:[%s1 + $0x48] sm:$0xff]
    %v44 = vld [vmem:[%s1 + $0x50] sm:$0xff]
    %v45 = vld [vmem:[%s1 + $0x58] sm:$0xff]
    %v46 = vld [vmem:[%s1 + $0x60] sm:$0xff]
    %v47 = vld [vmem:[%s1 + $0x68] sm:$0xff]
    %v48 = vld [vmem:[%s1 + $0x70] sm:$0xff]
    %v49 = vld [vmem:[%s1 + $0x78] sm:$0xff]
    %v50 = vld [vmem:[%s1 + $0x80] sm:$0xff]
    %v51 = vld [vmem:[%s1 + $0x88] sm:$0xff]
    %v52 = vld [vmem:[%s1 + $0x90] sm:$0xff]
    %v53 = vld [vmem:[%s1 + $0x98] sm:$0xff]
    %v54 = vld [vmem:[%s1 + $0xa0] sm:$0xff]
    %v55 = vld [vmem:[%s1 + $0xa8] sm:$0xff]
    %v56 = vld [vmem:[%s1 + $0xb0] sm:$0xff]
    %v57 = vld [vmem:[%s1 + $0xb8] sm:$0xff]
    %v58 = vld [vmem:[%s1 + $0xc0] sm:$0xff]
    %v59 = vld [vmem:[%s1 + $0xc8] sm:$0xff]
    %v60 = vld [vmem:[%s1 + $0xd0] sm:$0xff]
    %v61 = vld [vmem:[%s1 + $0xd8] sm:$0xff]
    %v62 = vld [vmem:[%s1 + $0xe0] sm:$0xff]
    %v63 = vld [vmem:[%s1 + $0xe8] sm:$0xff]
    %v64 = vld [vmem:[%s1 + $0xf0] sm:$0xff]
    %v65 = vld [vmem:[%s1 + $0xf8] sm:$0xff]
    %v66 = vld [vmem:[%s2] sm:$0xff]
    %v67 = vld [vmem:[%s2 + $0x8] sm:$0xff]
    %v68 = vld [vmem:[%s2 + $0x10] sm:$0xff]
    %v69 = vld [vmem:[%s2 + $0x18] sm:$0xff]
    %v70 = vld [vmem:[%s2 + $0x20] sm:$0xff]
    %v71 = vld [vmem:[%s2 + $0x28] sm:$0xff]
    %v72 = vld [vmem:[%s2 + $0x30] sm:$0xff]
    %v73 = vld [vmem:[%s2 + $0x38] sm:$0xff]
    %v74 = vld [vmem:[%s2 + $0x40] sm:$0xff]
    %v75 = vld [vmem:[%s2 + $0x48] sm:$0xff]
    %v76 = vld [vmem:[%s2 + $0x50] sm:$0xff]
    %v77 = vld [vmem:[%s2 + $0x58] sm:$0xff]
    %v78 = vld [vmem:[%s2 + $0x60] sm:$0xff]
    %v79 = vld [vmem:[%s2 + $0x68] sm:$0xff]
    %v80 = vld [vmem:[%s2 + $0x70] sm:$0xff]
    %v81 = vld [vmem:[%s2 + $0x78] sm:$0xff]
    %v82 = vld [vmem:[%s2 + $0x80] sm:$0xff]
    %v83 = vld [vmem:[%s2 + $0x88] sm:$0xff]
    %v84 = vld [vmem:[%s2 + $0x90] sm:$0xff]
    %v85 = vld [vmem:[%s2 + $0x98] sm:$0xff]
    %v86 = vld [vmem:[%s2 + $0xa0] sm:$0xff]
    %v87 = vld [vmem:[%s2 + $0xa8] sm:$0xff]
    %v88 = vld [vmem:[%s2 + $0xb0] sm:$0xff]
    %v89 = vld [vmem:[%s2 + $0xb8] sm:$0xff]
    %v90 = vld [vmem:[%s2 + $0xc0] sm:$0xff]
    %v91 = vld [vmem:[%s2 + $0xc8] sm:$0xff]
    %v92 = vld [vmem:[%s2 + $0xd0] sm:$0xff]
    %v93 = vld [vmem:[%s2 + $0xd8] sm:$0xff]
    %v94 = vld [vmem:[%s2 + $0xe0] sm:$0xff]
    %v95 = vld [vmem:[%s2 + $0xe8] sm:$0xff]
    %v96 = vld [vmem:[%s2 + $0xf0] sm:$0xff]
    %v97 = vld [vmem:[%s2 + $0xf8] sm:$0xff]
    %99 = vset.pattern.permute.xlu0 0
    %100 = vperm.xlu0 %99, %v66
    %v101 = vpop.permute.xlu0 %100
    %104 = vset.pattern.permute.xlu0 0
    %105 = vperm.xlu0 %104, %v67
    %v106 = vpop.permute.xlu0 %105
    %109 = vset.pattern.permute.xlu0 0
    %110 = vperm.xlu0 %109, %v68
    %v111 = vpop.permute.xlu0 %110
    %114 = vset.pattern.permute.xlu0 0
    %115 = vperm.xlu0 %114, %v69
    %v116 = vpop.permute.xlu0 %115
    %119 = vset.pattern.permute.xlu0 0
    %120 = vperm.xlu0 %119, %v70
    %v121 = vpop.permute.xlu0 %120
    %124 = vset.pattern.permute.xlu0 0
    %125 = vperm.xlu0 %124, %v71
    %v126 = vpop.permute.xlu0 %125
    %129 = vset.pattern.permute.xlu0 0
    %130 = vperm.xlu0 %129, %v72
    %v131 = vpop.permute.xlu0 %130
    %134 = vset.pattern.permute.xlu0 0
    %135 = vperm.xlu0 %134, %v73
    %v136 = vpop.permute.xlu0 %135
    %139 = vset.pattern.permute.xlu0 0
    %140 = vperm.xlu0 %139, %v74
    %v141 = vpop.permute.xlu0 %140
    %144 = vset.pattern.permute.xlu0 0
    %145 = vperm.xlu0 %144, %v75
    %v146 = vpop.permute.xlu0 %145
    %149 = vset.pattern.permute.xlu0 0
    %150 = vperm.xlu0 %149, %v76
    %v151 = vpop.permute.xlu0 %150
    %154 = vset.pattern.permute.xlu0 0
    %155 = vperm.xlu0 %154, %v77
    %v156 = vpop.permute.xlu0 %155
    %159 = vset.pattern.permute.xlu0 0
    %160 = vperm.xlu0 %159, %v78
    %v161 = vpop.permute.xlu0 %160
    %164 = vset.pattern.permute.xlu0 0
    %165 = vperm.xlu0 %164, %v79
    %v166 = vpop.permute.xlu0 %165
    %169 = vset.pattern.permute.xlu0 0
    %170 = vperm.xlu0 %169, %v80
    %v171 = vpop.permute.xlu0 %170
    %174 = vset.pattern.permute.xlu0 0
    %175 = vperm.xlu0 %174, %v81
    %v176 = vpop.permute.xlu0 %175
    %179 = vset.pattern.permute.xlu0 0
    %180 = vperm.xlu0 %179, %v82
    %v181 = vpop.permute.xlu0 %180
    %184 = vset.pattern.permute.xlu0 0
    %185 = vperm.xlu0 %184, %v83
    %v186 = vpop.permute.xlu0 %185
    %189 = vset.pattern.permute.xlu0 0
    %190 = vperm.xlu0 %189, %v84
    %v191 = vpop.permute.xlu0 %190
    %194 = vset.pattern.permute.xlu0 0
    %195 = vperm.xlu0 %194, %v85
    %v196 = vpop.permute.xlu0 %195
    %199 = vset.pattern.permute.xlu0 0
    %200 = vperm.xlu0 %199, %v86
    %v201 = vpop.permute.xlu0 %200
    %204 = vset.pattern.permute.xlu0 0
    %205 = vperm.xlu0 %204, %v87
    %v206 = vpop.permute.xlu0 %205
    %209 = vset.pattern.permute.xlu0 0
    %210 = vperm.xlu0 %209, %v88
    %v211 = vpop.permute.xlu0 %210
    %214 = vset.pattern.permute.xlu0 0
    %215 = vperm.xlu0 %214, %v89
    %v216 = vpop.permute.xlu0 %215
    %219 = vset.pattern.permute.xlu0 0
    %220 = vperm.xlu0 %219, %v90
    %v221 = vpop.permute.xlu0 %220
    %224 = vset.pattern.permute.xlu0 0
    %225 = vperm.xlu0 %224, %v91
    %v226 = vpop.permute.xlu0 %225
    %229 = vset.pattern.permute.xlu0 0
    %230 = vperm.xlu0 %229, %v92
    %v231 = vpop.permute.xlu0 %230
    %234 = vset.pattern.permute.xlu0 0
    %235 = vperm.xlu0 %234, %v93
    %v236 = vpop.permute.xlu0 %235
    %239 = vset.pattern.permute.xlu0 0
    %240 = vperm.xlu0 %239, %v94
    %v241 = vpop.permute.xlu0 %240
    %244 = vset.pattern.permute.xlu0 0
    %245 = vperm.xlu0 %244, %v95
    %v246 = vpop.permute.xlu0 %245
    %249 = vset.pattern.permute.xlu0 0
    %250 = vperm.xlu0 %249, %v96
    %v251 = vpop.permute.xlu0 %250
    %254 = vset.pattern.permute.xlu0 0
    %255 = vperm.xlu0 %254, %v97
    %v256 = vpop.permute.xlu0 %255
    %vm258 = vcmask 64512
    %v260 = vsel %vm258, %v34, 0
    %v263 = vsel %vm258, %v35, 0
    %v266 = vsel %vm258, %v36, 0
    %v269 = vsel %vm258, %v37, 0
    %v272 = vsel %vm258, %v38, 0
    %v275 = vsel %vm258, %v39, 0
    %v278 = vsel %vm258, %v40, 0
    %v281 = vsel %vm258, %v41, 0
    %v284 = vsel %vm258, %v42, 0
    %v287 = vsel %vm258, %v43, 0
    %v290 = vsel %vm258, %v44, 0
    %v293 = vsel %vm258, %v45, 0
    %v296 = vsel %vm258, %v46, 0
    %v299 = vsel %vm258, %v47, 0
    %v302 = vsel %vm258, %v48, 0
    %v305 = vsel %vm258, %v49, 0
    %v308 = vsel %vm258, %v50, 0
    %v311 = vsel %vm258, %v51, 0
    %v314 = vsel %vm258, %v52, 0
    %v317 = vsel %vm258, %v53, 0
    %v320 = vsel %vm258, %v54, 0
    %v323 = vsel %vm258, %v55, 0
    %v326 = vsel %vm258, %v56, 0
    %v329 = vsel %vm258, %v57, 0
    %v332 = vsel %vm258, %v58, 0
    %v335 = vsel %vm258, %v59, 0
    %v338 = vsel %vm258, %v60, 0
    %v341 = vsel %vm258, %v61, 0
    %v344 = vsel %vm258, %v62, 0
    %v347 = vsel %vm258, %v63, 0
    %v350 = vsel %vm258, %v64, 0
    %v353 = vsel %vm258, %v65, 0
    %355 = vmatprep.subr.mxu0 0.0
    %356 = vmatpush1.msra.mxu0 %v33
    %357 = vmatprep.subr.mxu0 0.0
    %358 = vmatpush1.msra.mxu0 0.0
    %359 = vmatprep.subr.mxu0 0.0
    %360 = vmatpush1.msra.mxu0 0.0
    %361 = vmatprep.subr.mxu0 0.0
    %362 = vmatpush1.msra.mxu0 0.0
    %363 = vmatprep.subr.mxu0 0.0
    %364 = vmatpush1.msra.mxu0 0.0
    %365 = vmatprep.subr.mxu0 0.0
    %366 = vmatpush1.msra.mxu0 0.0
    %367 = vmatprep.subr.mxu0 0.0
    %368 = vmatpush1.msra.mxu0 0.0
    %369 = vmatprep.subr.mxu0 0.0
    %370 = vmatpush1.msra.mxu0 0.0
    %371 = vmatprep.subr.mxu0 0.0
    %372 = vmatpush1.msra.mxu0 0.0
    %373 = vmatprep.subr.mxu0 0.0
    %374 = vmatpush1.msra.mxu0 0.0
    %375 = vmatprep.subr.mxu0 0.0
    %376 = vmatpush1.msra.mxu0 0.0
    %377 = vmatprep.subr.mxu0 0.0
    %378 = vmatpush1.msra.mxu0 0.0
    %379 = vmatprep.subr.mxu0 0.0
    %380 = vmatpush1.msra.mxu0 0.0
    %381 = vmatprep.subr.mxu0 0.0
    %382 = vmatpush1.msra.mxu0 0.0
    %383 = vmatprep.subr.mxu0 0.0
    %384 = vmatpush1.msra.mxu0 0.0
    %385 = vmatprep.subr.mxu0 0.0
    %386 = vmatpush1.msra.mxu0 0.0
    %387 = vmatprep.subr.mxu0 0.0
    %388 = vmatpush1.msra.mxu0 0.0
    %389 = vmatprep.subr.mxu0 0.0
    %390 = vmatpush1.msra.mxu0 0.0
    %391 = vmatprep.subr.mxu0 0.0
    %392 = vmatpush1.msra.mxu0 0.0
    %393 = vmatprep.subr.mxu0 0.0
    %394 = vmatpush1.msra.mxu0 0.0
    %395 = vmatprep.subr.mxu0 0.0
    %396 = vmatpush1.msra.mxu0 0.0
    %397 = vmatprep.subr.mxu0 0.0
    %398 = vmatpush1.msra.mxu0 0.0
    %399 = vmatprep.subr.mxu0 0.0
    %400 = vmatpush1.msra.mxu0 0.0
    %401 = vmatprep.subr.mxu0 0.0
    %402 = vmatpush1.msra.mxu0 0.0
    %403 = vmatprep.subr.mxu0 0.0
    %404 = vmatpush1.msra.mxu0 0.0
    %405 = vmatprep.subr.mxu0 0.0
    %406 = vmatpush1.msra.mxu0 0.0
    %407 = vmatprep.subr.mxu0 0.0
    %408 = vmatpush1.msra.mxu0 0.0
    %409 = vmatprep.subr.mxu0 0.0
    %410 = vmatpush1.msra.mxu0 0.0
    %411 = vmatprep.subr.mxu0 0.0
    %412 = vmatpush1.msra.mxu0 0.0
    %413 = vmatprep.subr.mxu0 0.0
    %414 = vmatpush1.msra.mxu0 0.0
    %415 = vmatprep.subr.mxu0 0.0
    %416 = vmatpush1.msra.mxu0 0.0
    %417 = vmatprep.subr.mxu0 0.0
    %418 = vmatpush1.msra.mxu0 0.0
    %419 = vmatprep.mubr.f32.mxu0 0.0
    %420 = vmatmul.mubr.f32.gmra.mrb[0].mxu0 %v260
    %v421 = vpop.f32.mrb[0].mxu0
    %v422 = vadd.f32 %v101, %v421
    %v423 = vpop.f32.mrb[0].mxu0
    %424 = vmatprep.mubr.f32.mxu0 0.0
    %425 = vmatmul.mubr.f32.gmra.mrb[0].mxu0 %v263
    %v426 = vpop.f32.mrb[0].mxu0
    %v427 = vadd.f32 %v106, %v426
    %v428 = vpop.f32.mrb[0].mxu0
    %429 = vmatprep.mubr.f32.mxu0 0.0
    %430 = vmatmul.mubr.f32.gmra.mrb[0].mxu0 %v266
    %v431 = vpop.f32.mrb[0].mxu0
    %v432 = vadd.f32 %v111, %v431
    %v433 = vpop.f32.mrb[0].mxu0
    %434 = vmatprep.mubr.f32.mxu0 0.0
    %435 = vmatmul.mubr.f32.gmra.mrb[0].mxu0 %v269
    %v436 = vpop.f32.mrb[0].mxu0
    %v437 = vadd.f32 %v116, %v436
    %v438 = vpop.f32.mrb[0].mxu0
    %439 = vmatprep.mubr.f32.mxu0 0.0
    %440 = vmatmul.mubr.f32.gmra.mrb[0].mxu0 %v272
    %v441 = vpop.f32.mrb[0].mxu0
    %v442 = vadd.f32 %v121, %v441
    %v443 = vpop.f32.mrb[0].mxu0
    %444 = vmatprep.mubr.f32.mxu0 0.0
    %445 = vmatmul.mubr.f32.gmra.mrb[0].mxu0 %v275
    %v446 = vpop.f32.mrb[0].mxu0
    %v447 = vadd.f32 %v126, %v446
    %v448 = vpop.f32.mrb[0].mxu0
    %449 = vmatprep.mubr.f32.mxu0 0.0
    %450 = vmatmul.mubr.f32.gmra.mrb[0].mxu0 %v278
    %v451 = vpop.f32.mrb[0].mxu0
    %v452 = vadd.f32 %v131, %v451
    %v453 = vpop.f32.mrb[0].mxu0
    %454 = vmatprep.mubr.f32.mxu0 0.0
    %455 = vmatmul.mubr.f32.gmra.mrb[0].mxu0 %v281
    %v456 = vpop.f32.mrb[0].mxu0
    %v457 = vadd.f32 %v136, %v456
    %v458 = vpop.f32.mrb[0].mxu0
    %459 = vmatprep.mubr.f32.mxu0 0.0
    %460 = vmatmul.mubr.f32.gmra.mrb[0].mxu0 %v284
    %v461 = vpop.f32.mrb[0].mxu0
    %v462 = vadd.f32 %v141, %v461
    %v463 = vpop.f32.mrb[0].mxu0
    %464 = vmatprep.mubr.f32.mxu0 0.0
    %465 = vmatmul.mubr.f32.gmra.mrb[0].mxu0 %v287
    %v466 = vpop.f32.mrb[0].mxu0
    %v467 = vadd.f32 %v146, %v466
    %v468 = vpop.f32.mrb[0].mxu0
    %469 = vmatprep.mubr.f32.mxu0 0.0
    %470 = vmatmul.mubr.f32.gmra.mrb[0].mxu0 %v290
    %v471 = vpop.f32.mrb[0].mxu0
    %v472 = vadd.f32 %v151, %v471
    %v473 = vpop.f32.mrb[0].mxu0
    %474 = vmatprep.mubr.f32.mxu0 0.0
    %475 = vmatmul.mubr.f32.gmra.mrb[0].mxu0 %v293
    %v476 = vpop.f32.mrb[0].mxu0
    %v477 = vadd.f32 %v156, %v476
    %v478 = vpop.f32.mrb[0].mxu0
    %479 = vmatprep.mubr.f32.mxu0 0.0
    %480 = vmatmul.mubr.f32.gmra.mrb[0].mxu0 %v296
    %v481 = vpop.f32.mrb[0].mxu0
    %v482 = vadd.f32 %v161, %v481
    %v483 = vpop.f32.mrb[0].mxu0
    %484 = vmatprep.mubr.f32.mxu0 0.0
    %485 = vmatmul.mubr.f32.gmra.mrb[0].mxu0 %v299
    %v486 = vpop.f32.mrb[0].mxu0
    %v487 = vadd.f32 %v166, %v486
    %v488 = vpop.f32.mrb[0].mxu0
    %489 = vmatprep.mubr.f32.mxu0 0.0
    %490 = vmatmul.mubr.f32.gmra.mrb[0].mxu0 %v302
    %v491 = vpop.f32.mrb[0].mxu0
    %v492 = vadd.f32 %v171, %v491
    %v493 = vpop.f32.mrb[0].mxu0
    %494 = vmatprep.mubr.f32.mxu0 0.0
    %495 = vmatmul.mubr.f32.gmra.mrb[0].mxu0 %v305
    %v496 = vpop.f32.mrb[0].mxu0
    %v497 = vadd.f32 %v176, %v496
    %v498 = vpop.f32.mrb[0].mxu0
    %499 = vmatprep.mubr.f32.mxu0 0.0
    %500 = vmatmul.mubr.f32.gmra.mrb[0].mxu0 %v308
    %v501 = vpop.f32.mrb[0].mxu0
    %v502 = vadd.f32 %v181, %v501
    %v503 = vpop.f32.mrb[0].mxu0
    %504 = vmatprep.mubr.f32.mxu0 0.0
    %505 = vmatmul.mubr.f32.gmra.mrb[0].mxu0 %v311
    %v506 = vpop.f32.mrb[0].mxu0
    %v507 = vadd.f32 %v186, %v506
    %v508 = vpop.f32.mrb[0].mxu0
    %509 = vmatprep.mubr.f32.mxu0 0.0
    %510 = vmatmul.mubr.f32.gmra.mrb[0].mxu0 %v314
    %v511 = vpop.f32.mrb[0].mxu0
    %v512 = vadd.f32 %v191, %v511
    %v513 = vpop.f32.mrb[0].mxu0
    %514 = vmatprep.mubr.f32.mxu0 0.0
    %515 = vmatmul.mubr.f32.gmra.mrb[0].mxu0 %v317
    %v516 = vpop.f32.mrb[0].mxu0
    %v517 = vadd.f32 %v196, %v516
    %v518 = vpop.f32.mrb[0].mxu0
    %519 = vmatprep.mubr.f32.mxu0 0.0
    %520 = vmatmul.mubr.f32.gmra.mrb[0].mxu0 %v320
    %v521 = vpop.f32.mrb[0].mxu0
    %v522 = vadd.f32 %v201, %v521
    %v523 = vpop.f32.mrb[0].mxu0
    %524 = vmatprep.mubr.f32.mxu0 0.0
    %525 = vmatmul.mubr.f32.gmra.mrb[0].mxu0 %v323
    %v526 = vpop.f32.mrb[0].mxu0
    %v527 = vadd.f32 %v206, %v526
    %v528 = vpop.f32.mrb[0].mxu0
    %529 = vmatprep.mubr.f32.mxu0 0.0
    %530 = vmatmul.mubr.f32.gmra.mrb[0].mxu0 %v326
    %v531 = vpop.f32.mrb[0].mxu0
    %v532 = vadd.f32 %v211, %v531
    %v533 = vpop.f32.mrb[0].mxu0
    %534 = vmatprep.mubr.f32.mxu0 0.0
    %535 = vmatmul.mubr.f32.gmra.mrb[0].mxu0 %v329
    %v536 = vpop.f32.mrb[0].mxu0
    %v537 = vadd.f32 %v216, %v536
    %v538 = vpop.f32.mrb[0].mxu0
    %539 = vmatprep.mubr.f32.mxu0 0.0
    %540 = vmatmul.mubr.f32.gmra.mrb[0].mxu0 %v332
    %v541 = vpop.f32.mrb[0].mxu0
    %v542 = vadd.f32 %v221, %v541
    %v543 = vpop.f32.mrb[0].mxu0
    %544 = vmatprep.mubr.f32.mxu0 0.0
    %545 = vmatmul.mubr.f32.gmra.mrb[0].mxu0 %v335
    %v546 = vpop.f32.mrb[0].mxu0
    %v547 = vadd.f32 %v226, %v546
    %v548 = vpop.f32.mrb[0].mxu0
    %549 = vmatprep.mubr.f32.mxu0 0.0
    %550 = vmatmul.mubr.f32.gmra.mrb[0].mxu0 %v338
    %v551 = vpop.f32.mrb[0].mxu0
    %v552 = vadd.f32 %v231, %v551
    %v553 = vpop.f32.mrb[0].mxu0
    %554 = vmatprep.mubr.f32.mxu0 0.0
    %555 = vmatmul.mubr.f32.gmra.mrb[0].mxu0 %v341
    %v556 = vpop.f32.mrb[0].mxu0
    %v557 = vadd.f32 %v236, %v556
    %v558 = vpop.f32.mrb[0].mxu0
    %559 = vmatprep.mubr.f32.mxu0 0.0
    %560 = vmatmul.mubr.f32.gmra.mrb[0].mxu0 %v344
    %v561 = vpop.f32.mrb[0].mxu0
    %v562 = vadd.f32 %v241, %v561
    %v563 = vpop.f32.mrb[0].mxu0
    %564 = vmatprep.mubr.f32.mxu0 0.0
    %565 = vmatmul.mubr.f32.gmra.mrb[0].mxu0 %v347
    %v566 = vpop.f32.mrb[0].mxu0
    %v567 = vadd.f32 %v246, %v566
    %v568 = vpop.f32.mrb[0].mxu0
    %569 = vmatprep.mubr.f32.mxu0 0.0
    %570 = vmatmul.mubr.f32.gmra.mrb[0].mxu0 %v350
    %v571 = vpop.f32.mrb[0].mxu0
    %v572 = vadd.f32 %v251, %v571
    %v573 = vpop.f32.mrb[0].mxu0
    %574 = vmatprep.mubr.f32.mxu0 0.0
    %575 = vmatmul.mubr.f32.gmra.mrb[0].mxu0 %v353
    %v576 = vpop.f32.mrb[0].mxu0
    %v577 = vadd.f32 %v256, %v576
    %v578 = vpop.f32.mrb[0].mxu0
    %579 = vdwg.mxu0
    %v580 = vmax.f32 %v422, 0.0
    %v581 = vmax.f32 %v427, 0.0
    %v582 = vmax.f32 %v432, 0.0
    %v583 = vmax.f32 %v437, 0.0
    %v584 = vmax.f32 %v442, 0.0
    %v585 = vmax.f32 %v447, 0.0
    %v586 = vmax.f32 %v452, 0.0
    %v587 = vmax.f32 %v457, 0.0
    %v588 = vmax.f32 %v462, 0.0
    %v589 = vmax.f32 %v467, 0.0
    %v590 = vmax.f32 %v472, 0.0
    %v591 = vmax.f32 %v477, 0.0
    %v592 = vmax.f32 %v482, 0.0
    %v593 = vmax.f32 %v487, 0.0
    %v594 = vmax.f32 %v492, 0.0
    %v595 = vmax.f32 %v497, 0.0
    %v596 = vmax.f32 %v502, 0.0
    %v597 = vmax.f32 %v507, 0.0
    %v598 = vmax.f32 %v512, 0.0
    %v599 = vmax.f32 %v517, 0.0
    %v600 = vmax.f32 %v522, 0.0
    %v601 = vmax.f32 %v527, 0.0
    %v602 = vmax.f32 %v532, 0.0
    %v603 = vmax.f32 %v537, 0.0
    %v604 = vmax.f32 %v542, 0.0
    %v605 = vmax.f32 %v547, 0.0
    %v606 = vmax.f32 %v552, 0.0
    %v607 = vmax.f32 %v557, 0.0
    %v608 = vmax.f32 %v562, 0.0
    %v609 = vmax.f32 %v567, 0.0
    %v610 = vmax.f32 %v572, 0.0
    %v611 = vmax.f32 %v577, 0.0
    %v612 = vld [vmem:[%s3] sm:$0xff]
    %v613 = vld [vmem:[%s3 + $0x8] sm:$0xff]
    %v614 = vld [vmem:[%s3 + $0x10] sm:$0xff]
    %v615 = vld [vmem:[%s3 + $0x18] sm:$0xff]
    %v616 = vld [vmem:[%s3 + $0x20] sm:$0xff]
    %v617 = vld [vmem:[%s3 + $0x28] sm:$0xff]
    %v618 = vld [vmem:[%s3 + $0x30] sm:$0xff]
    %v619 = vld [vmem:[%s3 + $0x38] sm:$0xff]
    %v620 = vld [vmem:[%s3 + $0x40] sm:$0xff]
    %v621 = vld [vmem:[%s3 + $0x48] sm:$0xff]
    %v622 = vld [vmem:[%s3 + $0x50] sm:$0xff]
    %v623 = vld [vmem:[%s3 + $0x58] sm:$0xff]
    %v624 = vld [vmem:[%s3 + $0x60] sm:$0xff]
    %v625 = vld [vmem:[%s3 + $0x68] sm:$0xff]
    %v626 = vld [vmem:[%s3 + $0x70] sm:$0xff]
    %v627 = vld [vmem:[%s3 + $0x78] sm:$0xff]
    %v628 = vld [vmem:[%s3 + $0x80] sm:$0xff]
    %v629 = vld [vmem:[%s3 + $0x88] sm:$0xff]
    %v630 = vld [vmem:[%s3 + $0x90] sm:$0xff]
    %v631 = vld [vmem:[%s3 + $0x98] sm:$0xff]
    %v632 = vld [vmem:[%s3 + $0xa0] sm:$0xff]
    %v633 = vld [vmem:[%s3 + $0xa8] sm:$0xff]
    %v634 = vld [vmem:[%s3 + $0xb0] sm:$0xff]
    %v635 = vld [vmem:[%s3 + $0xb8] sm:$0xff]
    %v636 = vld [vmem:[%s3 + $0xc0] sm:$0xff]
    %v637 = vld [vmem:[%s3 + $0xc8] sm:$0xff]
    %v638 = vld [vmem:[%s3 + $0xd0] sm:$0xff]
    %v639 = vld [vmem:[%s3 + $0xd8] sm:$0xff]
    %v640 = vld [vmem:[%s3 + $0xe0] sm:$0xff]
    %v641 = vld [vmem:[%s3 + $0xe8] sm:$0xff]
    %v642 = vld [vmem:[%s3 + $0xf0] sm:$0xff]
    %v643 = vld [vmem:[%s3 + $0xf8] sm:$0xff]
    %v644 = vld [vmem:[%s3 + $0x100] sm:$0xff]
    %v645 = vld [vmem:[%s3 + $0x108] sm:$0xff]
    %v646 = vld [vmem:[%s3 + $0x110] sm:$0xff]
    %v647 = vld [vmem:[%s3 + $0x118] sm:$0xff]
    %v648 = vld [vmem:[%s3 + $0x120] sm:$0xff]
    %v649 = vld [vmem:[%s3 + $0x128] sm:$0xff]
    %v650 = vld [vmem:[%s3 + $0x130] sm:$0xff]
    %v651 = vld [vmem:[%s3 + $0x138] sm:$0xff]
    %v652 = vld [vmem:[%s3 + $0x140] sm:$0xff]
    %v653 = vld [vmem:[%s3 + $0x148] sm:$0xff]
    %v654 = vld [vmem:[%s3 + $0x150] sm:$0xff]
    %v655 = vld [vmem:[%s3 + $0x158] sm:$0xff]
    %v656 = vld [vmem:[%s3 + $0x160] sm:$0xff]
    %v657 = vld [vmem:[%s3 + $0x168] sm:$0xff]
    %v658 = vld [vmem:[%s3 + $0x170] sm:$0xff]
    %v659 = vld [vmem:[%s3 + $0x178] sm:$0xff]
    %v660 = vld [vmem:[%s3 + $0x180] sm:$0xff]
    %v661 = vld [vmem:[%s3 + $0x188] sm:$0xff]
    %v662 = vld [vmem:[%s3 + $0x190] sm:$0xff]
    %v663 = vld [vmem:[%s3 + $0x198] sm:$0xff]
    %v664 = vld [vmem:[%s3 + $0x1a0] sm:$0xff]
    %v665 = vld [vmem:[%s3 + $0x1a8] sm:$0xff]
    %v666 = vld [vmem:[%s3 + $0x1b0] sm:$0xff]
    %v667 = vld [vmem:[%s3 + $0x1b8] sm:$0xff]
    %v668 = vld [vmem:[%s3 + $0x1c0] sm:$0xff]
    %v669 = vld [vmem:[%s3 + $0x1c8] sm:$0xff]
    %v670 = vld [vmem:[%s3 + $0x1d0] sm:$0xff]
    %v671 = vld [vmem:[%s3 + $0x1d8] sm:$0xff]
    %v672 = vld [vmem:[%s3 + $0x1e0] sm:$0xff]
    %v673 = vld [vmem:[%s3 + $0x1e8] sm:$0xff]
    %v674 = vld [vmem:[%s3 + $0x1f0] sm:$0xff]
    %v675 = vld [vmem:[%s3 + $0x1f8] sm:$0xff]
    %v676 = vld [vmem:[%s4] sm:$0xff]
    %v677 = vld [vmem:[%s4 + $0x8] sm:$0xff]
    %v678 = vld [vmem:[%s4 + $0x10] sm:$0xff]
    %v679 = vld [vmem:[%s4 + $0x18] sm:$0xff]
    %v680 = vld [vmem:[%s4 + $0x20] sm:$0xff]
    %v681 = vld [vmem:[%s4 + $0x28] sm:$0xff]
    %v682 = vld [vmem:[%s4 + $0x30] sm:$0xff]
    %v683 = vld [vmem:[%s4 + $0x38] sm:$0xff]
    %v684 = vld [vmem:[%s4 + $0x40] sm:$0xff]
    %v685 = vld [vmem:[%s4 + $0x48] sm:$0xff]
    %v686 = vld [vmem:[%s4 + $0x50] sm:$0xff]
    %v687 = vld [vmem:[%s4 + $0x58] sm:$0xff]
    %v688 = vld [vmem:[%s4 + $0x60] sm:$0xff]
    %v689 = vld [vmem:[%s4 + $0x68] sm:$0xff]
    %v690 = vld [vmem:[%s4 + $0x70] sm:$0xff]
    %v691 = vld [vmem:[%s4 + $0x78] sm:$0xff]
    %v692 = vld [vmem:[%s4 + $0x80] sm:$0xff]
    %v693 = vld [vmem:[%s4 + $0x88] sm:$0xff]
    %v694 = vld [vmem:[%s4 + $0x90] sm:$0xff]
    %v695 = vld [vmem:[%s4 + $0x98] sm:$0xff]
    %v696 = vld [vmem:[%s4 + $0xa0] sm:$0xff]
    %v697 = vld [vmem:[%s4 + $0xa8] sm:$0xff]
    %v698 = vld [vmem:[%s4 + $0xb0] sm:$0xff]
    %v699 = vld [vmem:[%s4 + $0xb8] sm:$0xff]
    %v700 = vld [vmem:[%s4 + $0xc0] sm:$0xff]
    %v701 = vld [vmem:[%s4 + $0xc8] sm:$0xff]
    %v702 = vld [vmem:[%s4 + $0xd0] sm:$0xff]
    %v703 = vld [vmem:[%s4 + $0xd8] sm:$0xff]
    %v704 = vld [vmem:[%s4 + $0xe0] sm:$0xff]
    %v705 = vld [vmem:[%s4 + $0xe8] sm:$0xff]
    %v706 = vld [vmem:[%s4 + $0xf0] sm:$0xff]
    %v707 = vld [vmem:[%s4 + $0xf8] sm:$0xff]
    %709 = vset.pattern.permute.xlu0 0
    %710 = vperm.xlu0 %709, %v676
    %v711 = vpop.permute.xlu0 %710
    %714 = vset.pattern.permute.xlu0 0
    %715 = vperm.xlu0 %714, %v677
    %v716 = vpop.permute.xlu0 %715
    %719 = vset.pattern.permute.xlu0 0
    %720 = vperm.xlu0 %719, %v678
    %v721 = vpop.permute.xlu0 %720
    %724 = vset.pattern.permute.xlu0 0
    %725 = vperm.xlu0 %724, %v679
    %v726 = vpop.permute.xlu0 %725
    %729 = vset.pattern.permute.xlu0 0
    %730 = vperm.xlu0 %729, %v680
    %v731 = vpop.permute.xlu0 %730
    %734 = vset.pattern.permute.xlu0 0
    %735 = vperm.xlu0 %734, %v681
    %v736 = vpop.permute.xlu0 %735
    %739 = vset.pattern.permute.xlu0 0
    %740 = vperm.xlu0 %739, %v682
    %v741 = vpop.permute.xlu0 %740
    %744 = vset.pattern.permute.xlu0 0
    %745 = vperm.xlu0 %744, %v683
    %v746 = vpop.permute.xlu0 %745
    %749 = vset.pattern.permute.xlu0 0
    %750 = vperm.xlu0 %749, %v684
    %v751 = vpop.permute.xlu0 %750
    %754 = vset.pattern.permute.xlu0 0
    %755 = vperm.xlu0 %754, %v685
    %v756 = vpop.permute.xlu0 %755
    %759 = vset.pattern.permute.xlu0 0
    %760 = vperm.xlu0 %759, %v686
    %v761 = vpop.permute.xlu0 %760
    %764 = vset.pattern.permute.xlu0 0
    %765 = vperm.xlu0 %764, %v687
    %v766 = vpop.permute.xlu0 %765
    %769 = vset.pattern.permute.xlu0 0
    %770 = vperm.xlu0 %769, %v688
    %v771 = vpop.permute.xlu0 %770
    %774 = vset.pattern.permute.xlu0 0
    %775 = vperm.xlu0 %774, %v689
    %v776 = vpop.permute.xlu0 %775
    %779 = vset.pattern.permute.xlu0 0
    %780 = vperm.xlu0 %779, %v690
    %v781 = vpop.permute.xlu0 %780
    %784 = vset.pattern.permute.xlu0 0
    %785 = vperm.xlu0 %784, %v691
    %v786 = vpop.permute.xlu0 %785
    %789 = vset.pattern.permute.xlu0 0
    %790 = vperm.xlu0 %789, %v692
    %v791 = vpop.permute.xlu0 %790
    %794 = vset.pattern.permute.xlu0 0
    %795 = vperm.xlu0 %794, %v693
    %v796 = vpop.permute.xlu0 %795
    %799 = vset.pattern.permute.xlu0 0
    %800 = vperm.xlu0 %799, %v694
    %v801 = vpop.permute.xlu0 %800
    %804 = vset.pattern.permute.xlu0 0
    %805 = vperm.xlu0 %804, %v695
    %v806 = vpop.permute.xlu0 %805
    %809 = vset.pattern.permute.xlu0 0
    %810 = vperm.xlu0 %809, %v696
    %v811 = vpop.permute.xlu0 %810
    %814 = vset.pattern.permute.xlu0 0
    %815 = vperm.xlu0 %814, %v697
    %v816 = vpop.permute.xlu0 %815
    %819 = vset.pattern.permute.xlu0 0
    %820 = vperm.xlu0 %819, %v698
    %v821 = vpop.permute.xlu0 %820
    %824 = vset.pattern.permute.xlu0 0
    %825 = vperm.xlu0 %824, %v699
    %v826 = vpop.permute.xlu0 %825
    %829 = vset.pattern.permute.xlu0 0
    %830 = vperm.xlu0 %829, %v700
    %v831 = vpop.permute.xlu0 %830
    %834 = vset.pattern.permute.xlu0 0
    %835 = vperm.xlu0 %834, %v701
    %v836 = vpop.permute.xlu0 %835
    %839 = vset.pattern.permute.xlu0 0
    %840 = vperm.xlu0 %839, %v702
    %v841 = vpop.permute.xlu0 %840
    %844 = vset.pattern.permute.xlu0 0
    %845 = vperm.xlu0 %844, %v703
    %v846 = vpop.permute.xlu0 %845
    %849 = vset.pattern.permute.xlu0 0
    %850 = vperm.xlu0 %849, %v704
    %v851 = vpop.permute.xlu0 %850
    %854 = vset.pattern.permute.xlu0 0
    %855 = vperm.xlu0 %854, %v705
    %v856 = vpop.permute.xlu0 %855
    %859 = vset.pattern.permute.xlu0 0
    %860 = vperm.xlu0 %859, %v706
    %v861 = vpop.permute.xlu0 %860
    %864 = vset.pattern.permute.xlu0 0
    %865 = vperm.xlu0 %864, %v707
    %v866 = vpop.permute.xlu0 %865
    %868 = vmatprep.subr.mxu0 0.0
    %869 = vmatpush1.msra.mxu0 %v580
    %870 = vmatprep.subr.mxu0 0.0
    %871 = vmatpush1.msra.mxu0 %v581
    %872 = vmatprep.subr.mxu0 0.0
    %873 = vmatpush1.msra.mxu0 %v582
    %874 = vmatprep.subr.mxu0 0.0
    %875 = vmatpush1.msra.mxu0 %v583
    %876 = vmatprep.subr.mxu0 0.0
    %877 = vmatpush1.msra.mxu0 %v584
    %878 = vmatprep.subr.mxu0 0.0
    %879 = vmatpush1.msra.mxu0 %v585
    %880 = vmatprep.subr.mxu0 0.0
    %881 = vmatpush1.msra.mxu0 %v586
    %882 = vmatprep.subr.mxu0 0.0
    %883 = vmatpush1.msra.mxu0 %v587
    %884 = vmatprep.subr.mxu0 0.0
    %885 = vmatpush1.msra.mxu0 %v588
    %886 = vmatprep.subr.mxu0 0.0
    %887 = vmatpush1.msra.mxu0 %v589
    %888 = vmatprep.subr.mxu0 0.0
    %889 = vmatpush1.msra.mxu0 %v590
    %890 = vmatprep.subr.mxu0 0.0
    %891 = vmatpush1.msra.mxu0 %v591
    %892 = vmatprep.subr.mxu0 0.0
    %893 = vmatpush1.msra.mxu0 %v592
    %894 = vmatprep.subr.mxu0 0.0
    %895 = vmatpush1.msra.mxu0 %v593
    %896 = vmatprep.subr.mxu0 0.0
    %897 = vmatpush1.msra.mxu0 %v594
    %898 = vmatprep.subr.mxu0 0.0
    %899 = vmatpush1.msra.mxu0 %v595
    %900 = vmatprep.subr.mxu0 0.0
    %901 = vmatpush1.msra.mxu0 %v596
    %902 = vmatprep.subr.mxu0 0.0
    %903 = vmatpush1.msra.mxu0 %v597
    %904 = vmatprep.subr.mxu0 0.0
    %905 = vmatpush1.msra.mxu0 %v598
    %906 = vmatprep.subr.mxu0 0.0
    %907 = vmatpush1.msra.mxu0 %v599
    %908 = vmatprep.subr.mxu0 0.0
    %909 = vmatpush1.msra.mxu0 %v600
    %910 = vmatprep.subr.mxu0 0.0
    %911 = vmatpush1.msra.mxu0 %v601
    %912 = vmatprep.subr.mxu0 0.0
    %913 = vmatpush1.msra.mxu0 %v602
    %914 = vmatprep.subr.mxu0 0.0
    %915 = vmatpush1.msra.mxu0 %v603
    %916 = vmatprep.subr.mxu0 0.0
    %917 = vmatpush1.msra.mxu0 %v604
    %918 = vmatprep.subr.mxu0 0.0
    %919 = vmatpush1.msra.mxu0 %v605
    %920 = vmatprep.subr.mxu0 0.0
    %921 = vmatpush1.msra.mxu0 %v606
    %922 = vmatprep.subr.mxu0 0.0
    %923 = vmatpush1.msra.mxu0 %v607
    %924 = vmatprep.subr.mxu0 0.0
    %925 = vmatpush1.msra.mxu0 %v608
    %926 = vmatprep.subr.mxu0 0.0
    %927 = vmatpush1.msra.mxu0 %v609
    %928 = vmatprep.subr.mxu0 0.0
    %929 = vmatpush1.msra.mxu0 %v610
    %930 = vmatprep.subr.mxu0 0.0
    %931 = vmatpush1.msra.mxu0 %v611
    %932 = vmatprep.mubr.f32.mxu0 %v613
    %933 = vmatmul.mubr.f32.gmra.mrb[0].mxu0 %v612
    %v934 = vpop.f32.mrb[0].mxu0
    %v935 = vadd.f32 %v711, %v934
    %v936 = vpop.f32.mrb[0].mxu0
    %937 = vmatprep.mubr.f32.mxu0 %v615
    %938 = vmatmul.mubr.f32.gmra.mrb[0].mxu0 %v614
    %v939 = vpop.f32.mrb[0].mxu0
    %v940 = vadd.f32 %v716, %v939
    %v941 = vpop.f32.mrb[0].mxu0
    %942 = vmatprep.mubr.f32.mxu0 %v617
    %943 = vmatmul.mubr.f32.gmra.mrb[0].mxu0 %v616
    %v944 = vpop.f32.mrb[0].mxu0
    %v945 = vadd.f32 %v721, %v944
    %v946 = vpop.f32.mrb[0].mxu0
    %947 = vmatprep.mubr.f32.mxu0 %v619
    %948 = vmatmul.mubr.f32.gmra.mrb[0].mxu0 %v618
    %v949 = vpop.f32.mrb[0].mxu0
    %v950 = vadd.f32 %v726, %v949
    %v951 = vpop.f32.mrb[0].mxu0
    %952 = vmatprep.mubr.f32.mxu0 %v621
    %953 = vmatmul.mubr.f32.gmra.mrb[0].mxu0 %v620
    %v954 = vpop.f32.mrb[0].mxu0
    %v955 = vadd.f32 %v731, %v954
    %v956 = vpop.f32.mrb[0].mxu0
    %957 = vmatprep.mubr.f32.mxu0 %v623
    %958 = vmatmul.mubr.f32.gmra.mrb[0].mxu0 %v622
    %v959 = vpop.f32.mrb[0].mxu0
    %v960 = vadd.f32 %v736, %v959
    %v961 = vpop.f32.mrb[0].mxu0
    %962 = vmatprep.mubr.f32.mxu0 %v625
    %963 = vmatmul.mubr.f32.gmra.mrb[0].mxu0 %v624
    %v964 = vpop.f32.mrb[0].mxu0
    %v965 = vadd.f32 %v741, %v964
    %v966 = vpop.f32.mrb[0].mxu0
    %967 = vmatprep.mubr.f32.mxu0 %v627
    %968 = vmatmul.mubr.f32.gmra.mrb[0].mxu0 %v626
    %v969 = vpop.f32.mrb[0].mxu0
    %v970 = vadd.f32 %v746, %v969
    %v971 = vpop.f32.mrb[0].mxu0
    %972 = vmatprep.mubr.f32.mxu0 %v629
    %973 = vmatmul.mubr.f32.gmra.mrb[0].mxu0 %v628
    %v974 = vpop.f32.mrb[0].mxu0
    %v975 = vadd.f32 %v751, %v974
    %v976 = vpop.f32.mrb[0].mxu0
    %977 = vmatprep.mubr.f32.mxu0 %v631
    %978 = vmatmul.mubr.f32.gmra.mrb[0].mxu0 %v630
    %v979 = vpop.f32.mrb[0].mxu0
    %v980 = vadd.f32 %v756, %v979
    %v981 = vpop.f32.mrb[0].mxu0
    %982 = vmatprep.mubr.f32.mxu0 %v633
    %983 = vmatmul.mubr.f32.gmra.mrb[0].mxu0 %v632
    %v984 = vpop.f32.mrb[0].mxu0
    %v985 = vadd.f32 %v761, %v984
    %v986 = vpop.f32.mrb[0].mxu0
    %987 = vmatprep.mubr.f32.mxu0 %v635
    %988 = vmatmul.mubr.f32.gmra.mrb[0].mxu0 %v634
    %v989 = vpop.f32.mrb[0].mxu0
    %v990 = vadd.f32 %v766, %v989
    %v991 = vpop.f32.mrb[0].mxu0
    %992 = vmatprep.mubr.f32.mxu0 %v637
    %993 = vmatmul.mubr.f32.gmra.mrb[0].mxu0 %v636
    %v994 = vpop.f32.mrb[0].mxu0
    %v995 = vadd.f32 %v771, %v994
    %v996 = vpop.f32.mrb[0].mxu0
    %997 = vmatprep.mubr.f32.mxu0 %v639
    %998 = vmatmul.mubr.f32.gmra.mrb[0].mxu0 %v638
    %v999 = vpop.f32.mrb[0].mxu0
    %v1000 = vadd.f32 %v776, %v999
    %v1001 = vpop.f32.mrb[0].mxu0
    %1002 = vmatprep.mubr.f32.mxu0 %v641
    %1003 = vmatmul.mubr.f32.gmra.mrb[0].mxu0 %v640
    %v1004 = vpop.f32.mrb[0].mxu0
    %v1005 = vadd.f32 %v781, %v1004
    %v1006 = vpop.f32.mrb[0].mxu0
    %1007 = vmatprep.mubr.f32.mxu0 %v643
    %1008 = vmatmul.mubr.f32.gmra.mrb[0].mxu0 %v642
    %v1009 = vpop.f32.mrb[0].mxu0
    %v1010 = vadd.f32 %v786, %v1009
    %v1011 = vpop.f32.mrb[0].mxu0
    %1012 = vmatprep.mubr.f32.mxu0 %v645
    %1013 = vmatmul.mubr.f32.gmra.mrb[0].mxu0 %v644
    %v1014 = vpop.f32.mrb[0].mxu0
    %v1015 = vadd.f32 %v791, %v1014
    %v1016 = vpop.f32.mrb[0].mxu0
    %1017 = vmatprep.mubr.f32.mxu0 %v647
    %1018 = vmatmul.mubr.f32.gmra.mrb[0].mxu0 %v646
    %v1019 = vpop.f32.mrb[0].mxu0
    %v1020 = vadd.f32 %v796, %v1019
    %v1021 = vpop.f32.mrb[0].mxu0
    %1022 = vmatprep.mubr.f32.mxu0 %v649
    %1023 = vmatmul.mubr.f32.gmra.mrb[0].mxu0 %v648
    %v1024 = vpop.f32.mrb[0].mxu0
    %v1025 = vadd.f32 %v801, %v1024
    %v1026 = vpop.f32.mrb[0].mxu0
    %1027 = vmatprep.mubr.f32.mxu0 %v651
    %1028 = vmatmul.mubr.f32.gmra.mrb[0].mxu0 %v650
    %v1029 = vpop.f32.mrb[0].mxu0
    %v1030 = vadd.f32 %v806, %v1029
    %v1031 = vpop.f32.mrb[0].mxu0
    %1032 = vmatprep.mubr.f32.mxu0 %v653
    %1033 = vmatmul.mubr.f32.gmra.mrb[0].mxu0 %v652
    %v1034 = vpop.f32.mrb[0].mxu0
    %v1035 = vadd.f32 %v811, %v1034
    %v1036 = vpop.f32.mrb[0].mxu0
    %1037 = vmatprep.mubr.f32.mxu0 %v655
    %1038 = vmatmul.mubr.f32.gmra.mrb[0].mxu0 %v654
    %v1039 = vpop.f32.mrb[0].mxu0
    %v1040 = vadd.f32 %v816, %v1039
    %v1041 = vpop.f32.mrb[0].mxu0
    %1042 = vmatprep.mubr.f32.mxu0 %v657
    %1043 = vmatmul.mubr.f32.gmra.mrb[0].mxu0 %v656
    %v1044 = vpop.f32.mrb[0].mxu0
    %v1045 = vadd.f32 %v821, %v1044
    %v1046 = vpop.f32.mrb[0].mxu0
    %1047 = vmatprep.mubr.f32.mxu0 %v659
    %1048 = vmatmul.mubr.f32.gmra.mrb[0].mxu0 %v658
    %v1049 = vpop.f32.mrb[0].mxu0
    %v1050 = vadd.f32 %v826, %v1049
    %v1051 = vpop.f32.mrb[0].mxu0
    %1052 = vmatprep.mubr.f32.mxu0 %v661
    %1053 = vmatmul.mubr.f32.gmra.mrb[0].mxu0 %v660
    %v1054 = vpop.f32.mrb[0].mxu0
    %v1055 = vadd.f32 %v831, %v1054
    %v1056 = vpop.f32.mrb[0].mxu0
    %1057 = vmatprep.mubr.f32.mxu0 %v663
    %1058 = vmatmul.mubr.f32.gmra.mrb[0].mxu0 %v662
    %v1059 = vpop.f32.mrb[0].mxu0
    %v1060 = vadd.f32 %v836, %v1059
    %v1061 = vpop.f32.mrb[0].mxu0
    %1062 = vmatprep.mubr.f32.mxu0 %v665
    %1063 = vmatmul.mubr.f32.gmra.mrb[0].mxu0 %v664
    %v1064 = vpop.f32.mrb[0].mxu0
    %v1065 = vadd.f32 %v841, %v1064
    %v1066 = vpop.f32.mrb[0].mxu0
    %1067 = vmatprep.mubr.f32.mxu0 %v667
    %1068 = vmatmul.mubr.f32.gmra.mrb[0].mxu0 %v666
    %v1069 = vpop.f32.mrb[0].mxu0
    %v1070 = vadd.f32 %v846, %v1069
    %v1071 = vpop.f32.mrb[0].mxu0
    %1072 = vmatprep.mubr.f32.mxu0 %v669
    %1073 = vmatmul.mubr.f32.gmra.mrb[0].mxu0 %v668
    %v1074 = vpop.f32.mrb[0].mxu0
    %v1075 = vadd.f32 %v851, %v1074
    %v1076 = vpop.f32.mrb[0].mxu0
    %1077 = vmatprep.mubr.f32.mxu0 %v671
    %1078 = vmatmul.mubr.f32.gmra.mrb[0].mxu0 %v670
    %v1079 = vpop.f32.mrb[0].mxu0
    %v1080 = vadd.f32 %v856, %v1079
    %v1081 = vpop.f32.mrb[0].mxu0
    %1082 = vmatprep.mubr.f32.mxu0 %v673
    %1083 = vmatmul.mubr.f32.gmra.mrb[0].mxu0 %v672
    %v1084 = vpop.f32.mrb[0].mxu0
    %v1085 = vadd.f32 %v861, %v1084
    %v1086 = vpop.f32.mrb[0].mxu0
    %1087 = vmatprep.mubr.f32.mxu0 %v675
    %1088 = vmatmul.mubr.f32.gmra.mrb[0].mxu0 %v674
    %v1089 = vpop.f32.mrb[0].mxu0
    %v1090 = vadd.f32 %v866, %v1089
    %v1091 = vpop.f32.mrb[0].mxu0
    %1092 = vdwg.mxu0
    %v1093 = vmax.f32 %v935, 0.0
    %v1094 = vmax.f32 %v940, 0.0
    %v1095 = vmax.f32 %v945, 0.0
    %v1096 = vmax.f32 %v950, 0.0
    %v1097 = vmax.f32 %v955, 0.0
    %v1098 = vmax.f32 %v960, 0.0
    %v1099 = vmax.f32 %v965, 0.0
    %v1100 = vmax.f32 %v970, 0.0
    %v1101 = vmax.f32 %v975, 0.0
    %v1102 = vmax.f32 %v980, 0.0
    %v1103 = vmax.f32 %v985, 0.0
    %v1104 = vmax.f32 %v990, 0.0
    %v1105 = vmax.f32 %v995, 0.0
    %v1106 = vmax.f32 %v1000, 0.0
    %v1107 = vmax.f32 %v1005, 0.0
    %v1108 = vmax.f32 %v1010, 0.0
    %v1109 = vmax.f32 %v1015, 0.0
    %v1110 = vmax.f32 %v1020, 0.0
    %v1111 = vmax.f32 %v1025, 0.0
    %v1112 = vmax.f32 %v1030, 0.0
    %v1113 = vmax.f32 %v1035, 0.0
    %v1114 = vmax.f32 %v1040, 0.0
    %v1115 = vmax.f32 %v1045, 0.0
    %v1116 = vmax.f32 %v1050, 0.0
    %v1117 = vmax.f32 %v1055, 0.0
    %v1118 = vmax.f32 %v1060, 0.0
    %v1119 = vmax.f32 %v1065, 0.0
    %v1120 = vmax.f32 %v1070, 0.0
    %v1121 = vmax.f32 %v1075, 0.0
    %v1122 = vmax.f32 %v1080, 0.0
    %v1123 = vmax.f32 %v1085, 0.0
    %v1124 = vmax.f32 %v1090, 0.0
    %v1125 = vld [vmem:[%s5] sm:$0xff]
    %v1126 = vld [vmem:[%s5 + $0x8] sm:$0xff]
    %v1127 = vld [vmem:[%s6] sm:$0xff]
    %1129 = vset.pattern.permute.xlu0 0
    %1130 = vperm.xlu0 %1129, %v1127
    %v1131 = vpop.permute.xlu0 %1130
    %1133 = vmatprep.subr.mxu0 0.0
    %1134 = vmatpush1.msra.mxu0 %v1093
    %1135 = vmatprep.subr.mxu0 0.0
    %1136 = vmatpush1.msra.mxu0 %v1094
    %1137 = vmatprep.subr.mxu0 0.0
    %1138 = vmatpush1.msra.mxu0 %v1095
    %1139 = vmatprep.subr.mxu0 0.0
    %1140 = vmatpush1.msra.mxu0 %v1096
    %1141 = vmatprep.subr.mxu0 0.0
    %1142 = vmatpush1.msra.mxu0 %v1097
    %1143 = vmatprep.subr.mxu0 0.0
    %1144 = vmatpush1.msra.mxu0 %v1098
    %1145 = vmatprep.subr.mxu0 0.0
    %1146 = vmatpush1.msra.mxu0 %v1099
    %1147 = vmatprep.subr.mxu0 0.0
    %1148 = vmatpush1.msra.mxu0 %v1100
    %1149 = vmatprep.subr.mxu0 0.0
    %1150 = vmatpush1.msra.mxu0 %v1101
    %1151 = vmatprep.subr.mxu0 0.0
    %1152 = vmatpush1.msra.mxu0 %v1102
    %1153 = vmatprep.subr.mxu0 0.0
    %1154 = vmatpush1.msra.mxu0 %v1103
    %1155 = vmatprep.subr.mxu0 0.0
    %1156 = vmatpush1.msra.mxu0 %v1104
    %1157 = vmatprep.subr.mxu0 0.0
    %1158 = vmatpush1.msra.mxu0 %v1105
    %1159 = vmatprep.subr.mxu0 0.0
    %1160 = vmatpush1.msra.mxu0 %v1106
    %1161 = vmatprep.subr.mxu0 0.0
    %1162 = vmatpush1.msra.mxu0 %v1107
    %1163 = vmatprep.subr.mxu0 0.0
    %1164 = vmatpush1.msra.mxu0 %v1108
    %1165 = vmatprep.subr.mxu0 0.0
    %1166 = vmatpush1.msra.mxu0 %v1109
    %1167 = vmatprep.subr.mxu0 0.0
    %1168 = vmatpush1.msra.mxu0 %v1110
    %1169 = vmatprep.subr.mxu0 0.0
    %1170 = vmatpush1.msra.mxu0 %v1111
    %1171 = vmatprep.subr.mxu0 0.0
    %1172 = vmatpush1.msra.mxu0 %v1112
    %1173 = vmatprep.subr.mxu0 0.0
    %1174 = vmatpush1.msra.mxu0 %v1113
    %1175 = vmatprep.subr.mxu0 0.0
    %1176 = vmatpush1.msra.mxu0 %v1114
    %1177 = vmatprep.subr.mxu0 0.0
    %1178 = vmatpush1.msra.mxu0 %v1115
    %1179 = vmatprep.subr.mxu0 0.0
    %1180 = vmatpush1.msra.mxu0 %v1116
    %1181 = vmatprep.subr.mxu0 0.0
    %1182 = vmatpush1.msra.mxu0 %v1117
    %1183 = vmatprep.subr.mxu0 0.0
    %1184 = vmatpush1.msra.mxu0 %v1118
    %1185 = vmatprep.subr.mxu0 0.0
    %1186 = vmatpush1.msra.mxu0 %v1119
    %1187 = vmatprep.subr.mxu0 0.0
    %1188 = vmatpush1.msra.mxu0 %v1120
    %1189 = vmatprep.subr.mxu0 0.0
    %1190 = vmatpush1.msra.mxu0 %v1121
    %1191 = vmatprep.subr.mxu0 0.0
    %1192 = vmatpush1.msra.mxu0 %v1122
    %1193 = vmatprep.subr.mxu0 0.0
    %1194 = vmatpush1.msra.mxu0 %v1123
    %1195 = vmatprep.subr.mxu0 0.0
    %1196 = vmatpush1.msra.mxu0 %v1124
    %1197 = vmatprep.mubr.f32.mxu0 %v1126
    %1198 = vmatmul.mubr.f32.gmra.mrb[0].mxu0 %v1125
    %v1199 = vpop.f32.mrb[0].mxu0
    %v1200 = vadd.f32 %v1131, %v1199
    %v1201 = vpop.f32.mrb[0].mxu0
    %1202 = vdwg.mxu0
    %v1203 = vld [vmem:[%s7] sm:$0xff]
    %1205 = vset.pattern.permute.xlu0 0
    %1206 = vperm.xlu0 %1205, %v1203
    %v1207 = vpop.permute.xlu0 %1206
    %v1209 = vmax.f32 %v1200, %v1207
    %v1210 = vld [vmem:[%s8] sm:$0xff]
    %1212 = vset.pattern.permute.xlu0 0
    %1213 = vperm.xlu0 %1212, %v1210
    %v1214 = vpop.permute.xlu0 %1213
    %v1216 = vmin.f32 %v1209, %v1214
    %1217 = vst.msk [vmem:[#allocation2] sm:$0xff] %vm258, %v1216
    // Predicated region
    $region38: #{tpu_custom_call.1} parent=1 // pred_check
      _
    $region39: #{tpu_custom_call.1} parent=1 // pred_check_branch
      %1219 = sbr.rel (0) target = $region41
    $region40: #{tpu_custom_call.1} parent=1 // pred_region
      %s1221 = ssub.s32 128, 128
      %1222 = vsyncadd [#allocation3], %s1221
      %s1224 = sshll.u32 [#allocation2], 4
      %s1225 = int_to_ptr.vmem [resolvable:$true] %s1224
      %1227 = dma.vmem_to_hbm [thread:$0]  %s1225, 128, %s9, [#allocation3]
    $region41: #{tpu_custom_call.1} parent=1 // pred_fallthru
      _
    // Predicated region
    $region42: #{tpu_custom_call.1} parent=1 // pred_check
      _
    $region43: #{tpu_custom_call.1} parent=1 // pred_check_branch
      %1229 = sbr.rel (0) target = $region45
    $region44: #{tpu_custom_call.1} parent=1 // pred_region
      %1230 = dma.done [#allocation3], 128
    $region45: #{tpu_custom_call.1} parent=1 // pred_fallthru
      _
    %1231 = vsyncpa [#allocation3], 1

</llo_original>
